<compile_context>
chip_gen: v5e
topology: v5e:2x2
jax: 0.10.0
libtpu: 0.0.40
codegen_flags: <defaults>
</compile_context>

<pallas_src>
import math
import jax
import jax.numpy as jnp
from jax.experimental import pallas as pl
from jax.experimental.pallas import tpu as pltpu


# ----------------------------------------------------------------------------
# Synthetic "Const" sizes (the real ones come from an external Const module).
# ----------------------------------------------------------------------------
class Const:
    dlt1 = list(range(4))                      # len = 4
    primary_disease_states = list(range(3))    # len = 3
    nodal_disease_states = list(range(3))      # len = 3
    ccs = list(range(5))                       # len = 5
    modifications = list(range(4))             # len = 4
    decisions = list(range(6))                 # len = 6  -> final out dim = 12


BASELINE_INPUT_SIZE = 8
HIDDEN = 32
EPS = 0.01

# Feature-group widths in the exact order of the torch concat (and of w1's rows).
GROUP_WIDTHS = (
    BASELINE_INPUT_SIZE,                 # xbase  (normalized)
    len(Const.dlt1),                     # xdlt1
    len(Const.dlt1),                     # xdlt2
    len(Const.primary_disease_states),   # xpd
    len(Const.nodal_disease_states),     # xnd
    len(Const.ccs),                      # xcc
    len(Const.modifications),            # xmod
)
N_GROUPS = len(GROUP_WIDTHS)

_offsets, _o = [], 0
for _w in GROUP_WIDTHS:
    _offsets.append(_o)
    _o += _w
GROUP_OFFSETS = tuple(_offsets)
RAW_INPUT_SIZE = _o                       # 31 = what the kernel actually consumes

# input_size as computed in DecisionModel.__init__ (includes the +2 token cols)
INPUT_SIZE = RAW_INPUT_SIZE + 2
OUT_SIZE = len(Const.decisions) * 2

# position -> constant 2-wide token appended by add_position_token
POSITION_TOKENS = {
    0: (0.0, 0.0),
    1: (1.0, 0.0),
    2: (0.0, 1.0),
    3: (1.0, 1.0),
}


# ----------------------------------------------------------------------------
# Pallas kernel:  o = sigmoid(relu(sum_g(x_g @ W1_g) + b1) @ W2 + b2)
# refs = (x_0..x_6, w1_0..w1_6, b1, w2, b2, out)
# ----------------------------------------------------------------------------
def _mlp_kernel(*refs):
    x_refs = refs[:N_GROUPS]
    w1_refs = refs[N_GROUPS:2 * N_GROUPS]
    b1_ref, w2_ref, b2_ref, o_ref = refs[2 * N_GROUPS:]

    cdt = w2_ref.dtype                    # compute dtype fed to the MXU (bf16 or f32)

    # First layer as a sum of per-group dots (avoids any concat of the inputs).
    acc = None
    for x_ref, w_ref in zip(x_refs, w1_refs):
        part = jnp.dot(x_ref[...].astype(cdt), w_ref[...],
                       preferred_element_type=jnp.float32)
        acc = part if acc is None else acc + part

    h = jnp.maximum(acc + b1_ref[...], 0.0)                   # f32 epilogue (ReLU)
    y = jnp.dot(h.astype(cdt), w2_ref[...],
                preferred_element_type=jnp.float32) + b2_ref[...]
    o_ref[...] = jax.nn.sigmoid(y).astype(o_ref.dtype)        # single fused f32 store


# ----------------------------------------------------------------------------
# Tiling helpers
# ----------------------------------------------------------------------------
def _round_up(x, m):
    return ((x + m - 1) // m) * m


_MIN_SPLIT_ROWS = 512       # don't split a tile across TCs below this many rows/step


def _choose_tile(n, tile_max):
    """Batch tile: multiple of 8 sublanes; >=2 grid steps for v7x megacore when the
    batch is big enough; capped so the lane-padded VMEM footprint stays modest."""
    n8 = _round_up(max(n, 1), 8)
    if n8 > tile_max:
        return tile_max                              # grid >= 2 automatically
    if n8 >= 2 * _MIN_SPLIT_ROWS:
        return _round_up(pl.cdiv(n8, 2), 8)          # exactly 2 steps -> both v7x TCs
    return n8                                        # small batch: single step


def decision_mlp_pallas(xs, w1_parts, b1, w2, b2, *, tile_max=2048):
    """Fused 2-layer MLP over 7 feature groups. Weights stay resident in VMEM,
    batch axis is tiled (partial last block allowed — no pad copy)."""
    n = xs[0].shape[0]
    out_dim = w2.shape[1]
    hidden = w2.shape[0]

    tn = _choose_tile(n, tile_max)
    grid = (pl.cdiv(n, tn),)

    x_specs = [pl.BlockSpec((tn, int(x.shape[1])), lambda i: (i, 0)) for x in xs]
    w1_specs = [pl.BlockSpec(tuple(w.shape), lambda i: (0, 0)) for w in w1_parts]
    tail_specs = [
        pl.BlockSpec(tuple(b1.shape), lambda i: (0, 0)),   # b1 resident
        pl.BlockSpec(tuple(w2.shape), lambda i: (0, 0)),   # w2 resident
        pl.BlockSpec(tuple(b2.shape), lambda i: (0, 0)),   # b2 resident
    ]

    in_bytes = sum(int(x.size) * x.dtype.itemsize for x in xs)
    w_bytes = (sum(int(w.size) * w.dtype.itemsize for w in w1_parts)
               + int(b1.size) * b1.dtype.itemsize
               + int(w2.size) * w2.dtype.itemsize
               + int(b2.size) * b2.dtype.itemsize)
    out_bytes = n * out_dim * 4
    flops = 2 * n * (RAW_INPUT_SIZE * hidden + hidden * out_dim)

    return pl.pallas_call(
        _mlp_kernel,
        out_shape=jax.ShapeDtypeStruct((n, out_dim), jnp.float32),
        grid=grid,
        in_specs=x_specs + w1_specs + tail_specs,
        out_specs=pl.BlockSpec((tn, out_dim), lambda i: (i, 0)),
        compiler_params=pltpu.CompilerParams(
            dimension_semantics=("parallel",),         # megacore sharding on v7x
            vmem_limit_bytes=32 * 1024 * 1024,         # v5e default (16 MiB) too small
        ),
        cost_estimate=pl.CostEstimate(
            flops=flops,
            transcendentals=n * out_dim,               # one sigmoid exp per output
            bytes_accessed=in_bytes + w_bytes + out_bytes),
    )(*xs, *w1_parts, b1, w2, b2)


# ----------------------------------------------------------------------------
# One-time parameter preparation (model-load time, NOT per forward call).
#   (x+eps)/(1+eps) @ W = x @ (W/(1+eps)) + (eps/(1+eps)) * sum(W, axis=0)
#   token @ W[-2:] is a constant row vector (position is a static Python int).
# W1 row layout must be [xbase | xdlt1 | xdlt2 | xpd | xnd | xcc | xmod | token].
# ----------------------------------------------------------------------------
def fold_first_layer(w1, b1, position):
    if position not in POSITION_TOKENS:
        raise ValueError(f"position must be one of 0..3, got {position!r}")
    scale = 1.0 / (1.0 + EPS)
    shift = EPS / (1.0 + EPS)
    w1_base = w1[:BASELINE_INPUT_SIZE]          # normalized block
    w1_rest = w1[BASELINE_INPUT_SIZE:-2]        # pass-through block
    w1_tok = w1[-2:]                            # position-token rows
    tok = jnp.asarray(POSITION_TOKENS[position], jnp.float32).reshape(1, 2)
    w1_fold = jnp.concatenate([w1_base * scale, w1_rest], axis=0)
    b1_fold = (b1
               + shift * jnp.sum(w1_base, axis=0, keepdims=True)
               + tok @ w1_tok)
    return w1_fold, b1_fold


def prepare_params(params, compute_dtype=jnp.bfloat16):
    """Fold normalization + position tokens into layer 1, split W1 per feature group,
    and cast matmul operands to compute_dtype.  Done once per model load."""
    w1, b1, w2, b2 = params["w1"], params["b1"], params["w2"], params["b2"]
    if w1.shape[0] != INPUT_SIZE:
        raise ValueError(f"w1 must have {INPUT_SIZE} rows "
                         "([xbase|xdlt1|xdlt2|xpd|xnd|xcc|xmod|token] order), "
                         f"got {w1.shape[0]}")
    w2c = w2.astype(compute_dtype)
    b2c = b2.astype(jnp.float32)
    prepared = {}
    for pos in POSITION_TOKENS:
        w1_fold, b1_fold = fold_first_layer(w1, b1, pos)
        parts = tuple(
            w1_fold[off:off + width].astype(compute_dtype)
            for off, width in zip(GROUP_OFFSETS, GROUP_WIDTHS))
        prepared[pos] = {"w1_parts": parts,
                         "b1": b1_fold.astype(jnp.float32),
                         "w2": w2c,
                         "b2": b2c}
    return prepared


# ----------------------------------------------------------------------------
# Wrapper reproducing DecisionModel.forward (inference: dropouts are identity).
# Feature groups go straight into the kernel — no concat materialized in HBM.
# ----------------------------------------------------------------------------
def decision_model_forward(prepared, xbase, xdlt1, xdlt2, xpd, xnd, xcc, xmod,
                           position=0):
    xs = (xbase, xdlt1, xdlt2, xpd, xnd, xcc, xmod)
    for x, width in zip(xs, GROUP_WIDTHS):
        if x.shape[1] != width:
            raise ValueError(f"feature group width mismatch: got {x.shape[1]}, "
                             f"expected {width}")
    p = prepared[position]
    return decision_mlp_pallas(xs, p["w1_parts"], p["b1"], p["w2"], p["b2"])


# ----------------------------------------------------------------------------
# Deterministic parameter init (mimics torch.nn.Linear uniform init).
# Weights stored pre-transposed as (in_features, out_features).
# ----------------------------------------------------------------------------
def init_params(key):
    k1, k2, k3, k4 = jax.random.split(key, 4)
    bound1 = 1.0 / math.sqrt(INPUT_SIZE)
    bound2 = 1.0 / math.sqrt(HIDDEN)
    w1 = jax.random.uniform(k1, (INPUT_SIZE, HIDDEN), jnp.float32, -bound1, bound1)
    b1 = jax.random.uniform(k2, (1, HIDDEN), jnp.float32, -bound1, bound1)
    w2 = jax.random.uniform(k3, (HIDDEN, OUT_SIZE), jnp.float32, -bound2, bound2)
    b2 = jax.random.uniform(k4, (1, OUT_SIZE), jnp.float32, -bound2, bound2)
    return {"w1": w1, "b1": b1, "w2": w2, "b2": b2}


if __name__ == "__main__":
    key = jax.random.PRNGKey(0)
    pkey, *ikeys = jax.random.split(key, 9)
    params = init_params(pkey)

    batch = 8
    position = 1
    xbase = jax.random.normal(ikeys[0], (batch, BASELINE_INPUT_SIZE), jnp.float32)
    xdlt1 = jax.random.normal(ikeys[1], (batch, len(Const.dlt1)), jnp.float32)
    xdlt2 = jax.random.normal(ikeys[2], (batch, len(Const.dlt1)), jnp.float32)
    xpd = jax.random.normal(ikeys[3], (batch, len(Const.primary_disease_states)),
                            jnp.float32)
    xnd = jax.random.normal(ikeys[4], (batch, len(Const.nodal_disease_states)),
                            jnp.float32)
    xcc = jax.random.normal(ikeys[5], (batch, len(Const.ccs)), jnp.float32)
    xmod = jax.random.normal(ikeys[6], (batch, len(Const.modifications)), jnp.float32)

    # Default (bf16 compute, f32 accumulation/epilogue) path.
    prepared_bf16 = prepare_params(params, compute_dtype=jnp.bfloat16)
    out = decision_model_forward(prepared_bf16, xbase, xdlt1, xdlt2, xpd, xnd, xcc,
                                 xmod, position=position)
    out = jax.block_until_ready(out)

    # Exact-precision path (f32 end to end) to verify forward-pass semantics.
    prepared_f32 = prepare_params(params, compute_dtype=jnp.float32)
    out_f32 = jax.block_until_ready(
        decision_model_forward(prepared_f32, xbase, xdlt1, xdlt2, xpd, xnd, xcc,
                               xmod, position=position))

    # Pure-JAX reference reproducing the original (un-folded) torch semantics.
    xb = (xbase - 0.0 + EPS) / (1.0 + EPS)
    xcat = jnp.concatenate([xb, xdlt1, xdlt2, xpd, xnd, xcc, xmod], axis=1)
    tok = jnp.broadcast_to(
        jnp.asarray(POSITION_TOKENS[position], jnp.float32), (batch, 2))
    xcat = jnp.concatenate([xcat, tok], axis=1)
    h = jnp.maximum(xcat @ params["w1"] + params["b1"], 0.0)
    ref = jax.nn.sigmoid(h @ params["w2"] + params["b2"])

    assert out.shape == (batch, OUT_SIZE)
    assert out_f32.shape == (batch, OUT_SIZE)
    assert jnp.allclose(out_f32, ref, atol=2e-5, rtol=2e-5)   # exact semantics
    assert jnp.allclose(out, ref, atol=2e-2, rtol=1e-2)       # bf16-compute path

    print("KERNEL_OK")
</pallas_src>

<mosaic_0001>
module attributes {stable_mosaic.version = 11 : i64} {
  func.func @_mlp_kernel(%arg0: i32, %arg1: memref<8x8xf32, #tpu.memory_space<vmem>>, %arg2: memref<8x4xf32, #tpu.memory_space<vmem>>, %arg3: memref<8x4xf32, #tpu.memory_space<vmem>>, %arg4: memref<8x3xf32, #tpu.memory_space<vmem>>, %arg5: memref<8x3xf32, #tpu.memory_space<vmem>>, %arg6: memref<8x5xf32, #tpu.memory_space<vmem>>, %arg7: memref<8x4xf32, #tpu.memory_space<vmem>>, %arg8: memref<8x32xbf16, #tpu.memory_space<vmem>>, %arg9: memref<4x32xbf16, #tpu.memory_space<vmem>>, %arg10: memref<4x32xbf16, #tpu.memory_space<vmem>>, %arg11: memref<3x32xbf16, #tpu.memory_space<vmem>>, %arg12: memref<3x32xbf16, #tpu.memory_space<vmem>>, %arg13: memref<5x32xbf16, #tpu.memory_space<vmem>>, %arg14: memref<4x32xbf16, #tpu.memory_space<vmem>>, %arg15: memref<1x32xf32, #tpu.memory_space<vmem>>, %arg16: memref<32x12xbf16, #tpu.memory_space<vmem>>, %arg17: memref<1x12xf32, #tpu.memory_space<vmem>>, %arg18: memref<8x12xf32, #tpu.memory_space<vmem>>) attributes {dimension_semantics = [#tpu.dimension_semantics<parallel>], iteration_bounds = array<i64: 1>, scalar_prefetch = 0 : i64, scratch_operands = 0 : i64, tpu.core_type = #tpu.core_type<tc>, window_params = [{transform_indices = @transform_0, window_bounds = array<i64: 8, 8>}, {transform_indices = @transform_1, window_bounds = array<i64: 8, 4>}, {transform_indices = @transform_2, window_bounds = array<i64: 8, 4>}, {transform_indices = @transform_3, window_bounds = array<i64: 8, 3>}, {transform_indices = @transform_4, window_bounds = array<i64: 8, 3>}, {transform_indices = @transform_5, window_bounds = array<i64: 8, 5>}, {transform_indices = @transform_6, window_bounds = array<i64: 8, 4>}, {pipeline_mode = #tpu.pipeline_mode<synchronous>, transform_indices = @transform_7, window_bounds = array<i64: 8, 32>}, {pipeline_mode = #tpu.pipeline_mode<synchronous>, transform_indices = @transform_8, window_bounds = array<i64: 4, 32>}, {pipeline_mode = #tpu.pipeline_mode<synchronous>, transform_indices = @transform_9, window_bounds = array<i64: 4, 32>}, {pipeline_mode = #tpu.pipeline_mode<synchronous>, transform_indices = @transform_10, window_bounds = array<i64: 3, 32>}, {pipeline_mode = #tpu.pipeline_mode<synchronous>, transform_indices = @transform_11, window_bounds = array<i64: 3, 32>}, {pipeline_mode = #tpu.pipeline_mode<synchronous>, transform_indices = @transform_12, window_bounds = array<i64: 5, 32>}, {pipeline_mode = #tpu.pipeline_mode<synchronous>, transform_indices = @transform_13, window_bounds = array<i64: 4, 32>}, {pipeline_mode = #tpu.pipeline_mode<synchronous>, transform_indices = @transform_14, window_bounds = array<i64: 1, 32>}, {pipeline_mode = #tpu.pipeline_mode<synchronous>, transform_indices = @transform_15, window_bounds = array<i64: 32, 12>}, {pipeline_mode = #tpu.pipeline_mode<synchronous>, transform_indices = @transform_16, window_bounds = array<i64: 1, 12>}, {transform_indices = @transform_17, window_bounds = array<i64: 8, 12>}]} {
    %c0 = arith.constant 0 : index
    %c0_0 = arith.constant 0 : index
    %0 = vector.load %arg1[%c0, %c0_0] : memref<8x8xf32, #tpu.memory_space<vmem>>, vector<8x8xf32>
    %1 = arith.truncf %0 : vector<8x8xf32> to vector<8x8xbf16>
    %c0_1 = arith.constant 0 : index
    %c0_2 = arith.constant 0 : index
    %2 = vector.load %arg8[%c0_1, %c0_2] : memref<8x32xbf16, #tpu.memory_space<vmem>>, vector<8x32xbf16>
    %cst = arith.constant dense<0.000000e+00> : vector<8x32xf32>
    %3 = tpu.matmul %1, %2, %cst {dimension_numbers = #tpu.dot_dimension_numbers<[1], [0], [0], [1], [0, 0, 1, 1], [], []>} : vector<8x8xbf16>, vector<8x32xbf16>, vector<8x32xf32> -> vector<8x32xf32>
    %c0_3 = arith.constant 0 : index
    %c0_4 = arith.constant 0 : index
    %4 = vector.load %arg2[%c0_3, %c0_4] : memref<8x4xf32, #tpu.memory_space<vmem>>, vector<8x4xf32>
    %5 = arith.truncf %4 : vector<8x4xf32> to vector<8x4xbf16>
    %c0_5 = arith.constant 0 : index
    %c0_6 = arith.constant 0 : index
    %6 = vector.load %arg9[%c0_5, %c0_6] : memref<4x32xbf16, #tpu.memory_space<vmem>>, vector<4x32xbf16>
    %cst_7 = arith.constant dense<0.000000e+00> : vector<8x32xf32>
    %7 = tpu.matmul %5, %6, %cst_7 {dimension_numbers = #tpu.dot_dimension_numbers<[1], [0], [0], [1], [0, 0, 1, 1], [], []>} : vector<8x4xbf16>, vector<4x32xbf16>, vector<8x32xf32> -> vector<8x32xf32>
    %8 = arith.addf %3, %7 : vector<8x32xf32>
    %c0_8 = arith.constant 0 : index
    %c0_9 = arith.constant 0 : index
    %9 = vector.load %arg3[%c0_8, %c0_9] : memref<8x4xf32, #tpu.memory_space<vmem>>, vector<8x4xf32>
    %10 = arith.truncf %9 : vector<8x4xf32> to vector<8x4xbf16>
    %c0_10 = arith.constant 0 : index
    %c0_11 = arith.constant 0 : index
    %11 = vector.load %arg10[%c0_10, %c0_11] : memref<4x32xbf16, #tpu.memory_space<vmem>>, vector<4x32xbf16>
    %cst_12 = arith.constant dense<0.000000e+00> : vector<8x32xf32>
    %12 = tpu.matmul %10, %11, %cst_12 {dimension_numbers = #tpu.dot_dimension_numbers<[1], [0], [0], [1], [0, 0, 1, 1], [], []>} : vector<8x4xbf16>, vector<4x32xbf16>, vector<8x32xf32> -> vector<8x32xf32>
    %13 = arith.addf %8, %12 : vector<8x32xf32>
    %c0_13 = arith.constant 0 : index
    %c0_14 = arith.constant 0 : index
    %14 = vector.load %arg4[%c0_13, %c0_14] : memref<8x3xf32, #tpu.memory_space<vmem>>, vector<8x3xf32>
    %15 = arith.truncf %14 : vector<8x3xf32> to vector<8x3xbf16>
    %c0_15 = arith.constant 0 : index
    %c0_16 = arith.constant 0 : index
    %16 = vector.load %arg11[%c0_15, %c0_16] : memref<3x32xbf16, #tpu.memory_space<vmem>>, vector<3x32xbf16>
    %cst_17 = arith.constant dense<0.000000e+00> : vector<8x32xf32>
    %17 = tpu.matmul %15, %16, %cst_17 {dimension_numbers = #tpu.dot_dimension_numbers<[1], [0], [0], [1], [0, 0, 1, 1], [], []>} : vector<8x3xbf16>, vector<3x32xbf16>, vector<8x32xf32> -> vector<8x32xf32>
    %18 = arith.addf %13, %17 : vector<8x32xf32>
    %c0_18 = arith.constant 0 : index
    %c0_19 = arith.constant 0 : index
    %19 = vector.load %arg5[%c0_18, %c0_19] : memref<8x3xf32, #tpu.memory_space<vmem>>, vector<8x3xf32>
    %20 = arith.truncf %19 : vector<8x3xf32> to vector<8x3xbf16>
    %c0_20 = arith.constant 0 : index
    %c0_21 = arith.constant 0 : index
    %21 = vector.load %arg12[%c0_20, %c0_21] : memref<3x32xbf16, #tpu.memory_space<vmem>>, vector<3x32xbf16>
    %cst_22 = arith.constant dense<0.000000e+00> : vector<8x32xf32>
    %22 = tpu.matmul %20, %21, %cst_22 {dimension_numbers = #tpu.dot_dimension_numbers<[1], [0], [0], [1], [0, 0, 1, 1], [], []>} : vector<8x3xbf16>, vector<3x32xbf16>, vector<8x32xf32> -> vector<8x32xf32>
    %23 = arith.addf %18, %22 : vector<8x32xf32>
    %c0_23 = arith.constant 0 : index
    %c0_24 = arith.constant 0 : index
    %24 = vector.load %arg6[%c0_23, %c0_24] : memref<8x5xf32, #tpu.memory_space<vmem>>, vector<8x5xf32>
    %25 = arith.truncf %24 : vector<8x5xf32> to vector<8x5xbf16>
    %c0_25 = arith.constant 0 : index
    %c0_26 = arith.constant 0 : index
    %26 = vector.load %arg13[%c0_25, %c0_26] : memref<5x32xbf16, #tpu.memory_space<vmem>>, vector<5x32xbf16>
    %cst_27 = arith.constant dense<0.000000e+00> : vector<8x32xf32>
    %27 = tpu.matmul %25, %26, %cst_27 {dimension_numbers = #tpu.dot_dimension_numbers<[1], [0], [0], [1], [0, 0, 1, 1], [], []>} : vector<8x5xbf16>, vector<5x32xbf16>, vector<8x32xf32> -> vector<8x32xf32>
    %28 = arith.addf %23, %27 : vector<8x32xf32>
    %c0_28 = arith.constant 0 : index
    %c0_29 = arith.constant 0 : index
    %29 = vector.load %arg7[%c0_28, %c0_29] : memref<8x4xf32, #tpu.memory_space<vmem>>, vector<8x4xf32>
    %30 = arith.truncf %29 : vector<8x4xf32> to vector<8x4xbf16>
    %c0_30 = arith.constant 0 : index
    %c0_31 = arith.constant 0 : index
    %31 = vector.load %arg14[%c0_30, %c0_31] : memref<4x32xbf16, #tpu.memory_space<vmem>>, vector<4x32xbf16>
    %cst_32 = arith.constant dense<0.000000e+00> : vector<8x32xf32>
    %32 = tpu.matmul %30, %31, %cst_32 {dimension_numbers = #tpu.dot_dimension_numbers<[1], [0], [0], [1], [0, 0, 1, 1], [], []>} : vector<8x4xbf16>, vector<4x32xbf16>, vector<8x32xf32> -> vector<8x32xf32>
    %33 = arith.addf %28, %32 : vector<8x32xf32>
    %c0_33 = arith.constant 0 : index
    %c0_34 = arith.constant 0 : index
    %34 = vector.load %arg15[%c0_33, %c0_34] : memref<1x32xf32, #tpu.memory_space<vmem>>, vector<1x32xf32>
    %35 = vector.broadcast %34 : vector<1x32xf32> to vector<8x32xf32>
    %36 = arith.addf %33, %35 : vector<8x32xf32>
    %cst_35 = arith.constant 0.000000e+00 : f32
    %37 = vector.broadcast %cst_35 : f32 to vector<8x32xf32>
    %38 = arith.maximumf %36, %37 : vector<8x32xf32>
    %39 = arith.truncf %38 : vector<8x32xf32> to vector<8x32xbf16>
    %c0_36 = arith.constant 0 : index
    %c0_37 = arith.constant 0 : index
    %40 = vector.load %arg16[%c0_36, %c0_37] : memref<32x12xbf16, #tpu.memory_space<vmem>>, vector<32x12xbf16>
    %cst_38 = arith.constant dense<0.000000e+00> : vector<8x12xf32>
    %41 = tpu.matmul %39, %40, %cst_38 {dimension_numbers = #tpu.dot_dimension_numbers<[1], [0], [0], [1], [0, 0, 1, 1], [], []>} : vector<8x32xbf16>, vector<32x12xbf16>, vector<8x12xf32> -> vector<8x12xf32>
    %c0_39 = arith.constant 0 : index
    %c0_40 = arith.constant 0 : index
    %42 = vector.load %arg17[%c0_39, %c0_40] : memref<1x12xf32, #tpu.memory_space<vmem>>, vector<1x12xf32>
    %43 = vector.broadcast %42 : vector<1x12xf32> to vector<8x12xf32>
    %44 = arith.addf %41, %43 : vector<8x12xf32>
    %45 = arith.negf %44 : vector<8x12xf32>
    %46 = math.exp %45 : vector<8x12xf32>
    %cst_41 = arith.constant 1.000000e+00 : f32
    %47 = vector.broadcast %cst_41 : f32 to vector<8x12xf32>
    %48 = arith.addf %47, %46 : vector<8x12xf32>
    %49 = arith.divf %47, %48 : vector<8x12xf32>
    %c0_42 = arith.constant 0 : index
    %c0_43 = arith.constant 0 : index
    %50 = vector.load %arg18[%c0_42, %c0_43] : memref<8x12xf32, #tpu.memory_space<vmem>>, vector<8x12xf32>
    tpu.vector_store %arg18[%c0_42, %c0_43], %49 {strides = array<i32>} : memref<8x12xf32, #tpu.memory_space<vmem>>, vector<8x12xf32>,
    return
  }
  func.func @transform_0(%arg0: i32) -> (i32, i32) {
    %c0_i32 = arith.constant 0 : i32
    %c0_i32_0 = arith.constant 0 : i32
    return %arg0, %c0_i32 : i32, i32
  }
  func.func @transform_1(%arg0: i32) -> (i32, i32) {
    %c0_i32 = arith.constant 0 : i32
    %c0_i32_0 = arith.constant 0 : i32
    return %arg0, %c0_i32 : i32, i32
  }
  func.func @transform_2(%arg0: i32) -> (i32, i32) {
    %c0_i32 = arith.constant 0 : i32
    %c0_i32_0 = arith.constant 0 : i32
    return %arg0, %c0_i32 : i32, i32
  }
  func.func @transform_3(%arg0: i32) -> (i32, i32) {
    %c0_i32 = arith.constant 0 : i32
    %c0_i32_0 = arith.constant 0 : i32
    return %arg0, %c0_i32 : i32, i32
  }
  func.func @transform_4(%arg0: i32) -> (i32, i32) {
    %c0_i32 = arith.constant 0 : i32
    %c0_i32_0 = arith.constant 0 : i32
    return %arg0, %c0_i32 : i32, i32
  }
  func.func @transform_5(%arg0: i32) -> (i32, i32) {
    %c0_i32 = arith.constant 0 : i32
    %c0_i32_0 = arith.constant 0 : i32
    return %arg0, %c0_i32 : i32, i32
  }
  func.func @transform_6(%arg0: i32) -> (i32, i32) {
    %c0_i32 = arith.constant 0 : i32
    %c0_i32_0 = arith.constant 0 : i32
    return %arg0, %c0_i32 : i32, i32
  }
  func.func @transform_7(%arg0: i32) -> (i32, i32) {
    %c0_i32 = arith.constant 0 : i32
    %c0_i32_0 = arith.constant 0 : i32
    %c0_i32_1 = arith.constant 0 : i32
    return %c0_i32, %c0_i32_0 : i32, i32
  }
  func.func @transform_8(%arg0: i32) -> (i32, i32) {
    %c0_i32 = arith.constant 0 : i32
    %c0_i32_0 = arith.constant 0 : i32
    %c0_i32_1 = arith.constant 0 : i32
    return %c0_i32, %c0_i32_0 : i32, i32
  }
  func.func @transform_9(%arg0: i32) -> (i32, i32) {
    %c0_i32 = arith.constant 0 : i32
    %c0_i32_0 = arith.constant 0 : i32
    %c0_i32_1 = arith.constant 0 : i32
    return %c0_i32, %c0_i32_0 : i32, i32
  }
  func.func @transform_10(%arg0: i32) -> (i32, i32) {
    %c0_i32 = arith.constant 0 : i32
    %c0_i32_0 = arith.constant 0 : i32
    %c0_i32_1 = arith.constant 0 : i32
    return %c0_i32, %c0_i32_0 : i32, i32
  }
  func.func @transform_11(%arg0: i32) -> (i32, i32) {
    %c0_i32 = arith.constant 0 : i32
    %c0_i32_0 = arith.constant 0 : i32
    %c0_i32_1 = arith.constant 0 : i32
    return %c0_i32, %c0_i32_0 : i32, i32
  }
  func.func @transform_12(%arg0: i32) -> (i32, i32) {
    %c0_i32 = arith.constant 0 : i32
    %c0_i32_0 = arith.constant 0 : i32
    %c0_i32_1 = arith.constant 0 : i32
    return %c0_i32, %c0_i32_0 : i32, i32
  }
  func.func @transform_13(%arg0: i32) -> (i32, i32) {
    %c0_i32 = arith.constant 0 : i32
    %c0_i32_0 = arith.constant 0 : i32
    %c0_i32_1 = arith.constant 0 : i32
    return %c0_i32, %c0_i32_0 : i32, i32
  }
  func.func @transform_14(%arg0: i32) -> (i32, i32) {
    %c0_i32 = arith.constant 0 : i32
    %c0_i32_0 = arith.constant 0 : i32
    %c0_i32_1 = arith.constant 0 : i32
    return %c0_i32, %c0_i32_0 : i32, i32
  }
  func.func @transform_15(%arg0: i32) -> (i32, i32) {
    %c0_i32 = arith.constant 0 : i32
    %c0_i32_0 = arith.constant 0 : i32
    %c0_i32_1 = arith.constant 0 : i32
    return %c0_i32, %c0_i32_0 : i32, i32
  }
  func.func @transform_16(%arg0: i32) -> (i32, i32) {
    %c0_i32 = arith.constant 0 : i32
    %c0_i32_0 = arith.constant 0 : i32
    %c0_i32_1 = arith.constant 0 : i32
    return %c0_i32, %c0_i32_0 : i32, i32
  }
  func.func @transform_17(%arg0: i32) -> (i32, i32) {
    %c0_i32 = arith.constant 0 : i32
    %c0_i32_0 = arith.constant 0 : i32
    return %arg0, %c0_i32 : i32, i32
  }
}

</mosaic_0001>

<llo_original>
// kernel: tpu_custom_call.1
$region0: #{tpu_custom_call.1}
  #allocation0 [shape = 'u32[]', space=smem, size = 0x4, offset = 0x4, fixed_abs, tag = 'smem constant byte address 0x4 - core index']
  #allocation1 [shape = 'u32[72,128]{1,0:T(1,128)}', space=vmem, size = 0x9000, scoped, tag = 'internal scratch']
  %s0 = inlined_call_operand.vmem [shape: f32[8,8], index: 0, kind: input, shape index: {}]
  %s1 = inlined_call_operand.vmem [shape: f32[8,4], index: 1, kind: input, shape index: {}]
  %s2 = inlined_call_operand.vmem [shape: f32[8,4], index: 2, kind: input, shape index: {}]
  %s3 = inlined_call_operand.vmem [shape: f32[8,3], index: 3, kind: input, shape index: {}]
  %s4 = inlined_call_operand.vmem [shape: f32[8,3], index: 4, kind: input, shape index: {}]
  %s5 = inlined_call_operand.vmem [shape: f32[8,5], index: 5, kind: input, shape index: {}]
  %s6 = inlined_call_operand.vmem [shape: f32[8,4], index: 6, kind: input, shape index: {}]
  %s7 = inlined_call_operand.vmem [shape: bf16[8,32], index: 7, kind: input, shape index: {}]
  %s8 = inlined_call_operand.vmem [shape: bf16[4,32], index: 8, kind: input, shape index: {}]
  %s9 = inlined_call_operand.vmem [shape: bf16[4,32], index: 9, kind: input, shape index: {}]
  %s10 = inlined_call_operand.vmem [shape: bf16[3,32], index: 10, kind: input, shape index: {}]
  %s11 = inlined_call_operand.vmem [shape: bf16[3,32], index: 11, kind: input, shape index: {}]
  %s12 = inlined_call_operand.vmem [shape: bf16[5,32], index: 12, kind: input, shape index: {}]
  %s13 = inlined_call_operand.vmem [shape: bf16[4,32], index: 13, kind: input, shape index: {}]
  %s14 = inlined_call_operand.vmem [shape: f32[1,32], index: 14, kind: input, shape index: {}]
  %s15 = inlined_call_operand.vmem [shape: bf16[32,12], index: 15, kind: input, shape index: {}]
  %s16 = inlined_call_operand.vmem [shape: f32[1,12], index: 16, kind: input, shape index: {}]
  %s17 = inlined_call_operand.hbm [shape: f32[8,12], index: 17, kind: output, shape index: {}]
  %s18 = sld [smem:[#allocation0]]
  $region78: #{tpu_custom_call.1} parent=0
    _
  %s20 = ssub.s32 1, %s18
  %s21 = scalar_select 0, %s20, %s18
  $region1: #{tpu_custom_call.1} parent=0
    #allocation2 [shape = 'u8[4096]{0}', space=vmem, size = 0x1000, scoped, tag = 'output window, operand 0, single buffered']
    #allocation3 [shape = 's32[1]{0}', space=sflag, size = 0x4, scoped, tag = 'scoped memory for tpu_custom_call.1']
    %22 = vsyncpa [#allocation3], 0
    // Predicated region
    $region2: #{tpu_custom_call.1} parent=1 // pred_check
      _
    $region3: #{tpu_custom_call.1} parent=1 // pred_check_branch
      %24 = sbr.rel (0) target = $region5
    $region4: #{tpu_custom_call.1} parent=1 // pred_region
      _
    $region5: #{tpu_custom_call.1} parent=1 // pred_fallthru
      _
    // Predicated region
    $region6: #{tpu_custom_call.1} parent=1 // pred_check
      _
    $region7: #{tpu_custom_call.1} parent=1 // pred_check_branch
      %26 = sbr.rel (0) target = $region9
    $region8: #{tpu_custom_call.1} parent=1 // pred_region
      _
    $region9: #{tpu_custom_call.1} parent=1 // pred_fallthru
      _
    // Predicated region
    $region10: #{tpu_custom_call.1} parent=1 // pred_check
      _
    $region11: #{tpu_custom_call.1} parent=1 // pred_check_branch
      %28 = sbr.rel (0) target = $region13
    $region12: #{tpu_custom_call.1} parent=1 // pred_region
      _
    $region13: #{tpu_custom_call.1} parent=1 // pred_fallthru
      _
    // Predicated region
    $region14: #{tpu_custom_call.1} parent=1 // pred_check
      _
    $region15: #{tpu_custom_call.1} parent=1 // pred_check_branch
      %30 = sbr.rel (0) target = $region17
    $region16: #{tpu_custom_call.1} parent=1 // pred_region
      _
    $region17: #{tpu_custom_call.1} parent=1 // pred_fallthru
      _
    // Predicated region
    $region18: #{tpu_custom_call.1} parent=1 // pred_check
      _
    $region19: #{tpu_custom_call.1} parent=1 // pred_check_branch
      %32 = sbr.rel (0) target = $region21
    $region20: #{tpu_custom_call.1} parent=1 // pred_region
      _
    $region21: #{tpu_custom_call.1} parent=1 // pred_fallthru
      _
    // Predicated region
    $region22: #{tpu_custom_call.1} parent=1 // pred_check
      _
    $region23: #{tpu_custom_call.1} parent=1 // pred_check_branch
      %34 = sbr.rel (0) target = $region25
    $region24: #{tpu_custom_call.1} parent=1 // pred_region
      _
    $region25: #{tpu_custom_call.1} parent=1 // pred_fallthru
      _
    // Predicated region
    $region26: #{tpu_custom_call.1} parent=1 // pred_check
      _
    $region27: #{tpu_custom_call.1} parent=1 // pred_check_branch
      %36 = sbr.rel (0) target = $region29
    $region28: #{tpu_custom_call.1} parent=1 // pred_region
      _
    $region29: #{tpu_custom_call.1} parent=1 // pred_fallthru
      _
    // Predicated region
    $region30: #{tpu_custom_call.1} parent=1 // pred_check
      _
    $region31: #{tpu_custom_call.1} parent=1 // pred_check_branch
      %38 = sbr.rel (0) target = $region33
    $region32: #{tpu_custom_call.1} parent=1 // pred_region
      _
    $region33: #{tpu_custom_call.1} parent=1 // pred_fallthru
      _
    // Predicated region
    $region34: #{tpu_custom_call.1} parent=1 // pred_check
      _
    $region35: #{tpu_custom_call.1} parent=1 // pred_check_branch
      %40 = sbr.rel (0) target = $region37
    $region36: #{tpu_custom_call.1} parent=1 // pred_region
      _
    $region37: #{tpu_custom_call.1} parent=1 // pred_fallthru
      _
    // Predicated region
    $region38: #{tpu_custom_call.1} parent=1 // pred_check
      _
    $region39: #{tpu_custom_call.1} parent=1 // pred_check_branch
      %42 = sbr.rel (0) target = $region41
    $region40: #{tpu_custom_call.1} parent=1 // pred_region
      _
    $region41: #{tpu_custom_call.1} parent=1 // pred_fallthru
      _
    // Predicated region
    $region42: #{tpu_custom_call.1} parent=1 // pred_check
      _
    $region43: #{tpu_custom_call.1} parent=1 // pred_check_branch
      %44 = sbr.rel (0) target = $region45
    $region44: #{tpu_custom_call.1} parent=1 // pred_region
      _
    $region45: #{tpu_custom_call.1} parent=1 // pred_fallthru
      _
    // Predicated region
    $region46: #{tpu_custom_call.1} parent=1 // pred_check
      _
    $region47: #{tpu_custom_call.1} parent=1 // pred_check_branch
      %46 = sbr.rel (0) target = $region49
    $region48: #{tpu_custom_call.1} parent=1 // pred_region
      _
    $region49: #{tpu_custom_call.1} parent=1 // pred_fallthru
      _
    // Predicated region
    $region50: #{tpu_custom_call.1} parent=1 // pred_check
      _
    $region51: #{tpu_custom_call.1} parent=1 // pred_check_branch
      %48 = sbr.rel (0) target = $region53
    $region52: #{tpu_custom_call.1} parent=1 // pred_region
      _
    $region53: #{tpu_custom_call.1} parent=1 // pred_fallthru
      _
    // Predicated region
    $region54: #{tpu_custom_call.1} parent=1 // pred_check
      _
    $region55: #{tpu_custom_call.1} parent=1 // pred_check_branch
      %50 = sbr.rel (0) target = $region57
    $region56: #{tpu_custom_call.1} parent=1 // pred_region
      _
    $region57: #{tpu_custom_call.1} parent=1 // pred_fallthru
      _
    // Predicated region
    $region58: #{tpu_custom_call.1} parent=1 // pred_check
      _
    $region59: #{tpu_custom_call.1} parent=1 // pred_check_branch
      %52 = sbr.rel (0) target = $region61
    $region60: #{tpu_custom_call.1} parent=1 // pred_region
      _
    $region61: #{tpu_custom_call.1} parent=1 // pred_fallthru
      _
    // Predicated region
    $region62: #{tpu_custom_call.1} parent=1 // pred_check
      _
    $region63: #{tpu_custom_call.1} parent=1 // pred_check_branch
      %54 = sbr.rel (0) target = $region65
    $region64: #{tpu_custom_call.1} parent=1 // pred_region
      _
    $region65: #{tpu_custom_call.1} parent=1 // pred_fallthru
      _
    // Predicated region
    $region66: #{tpu_custom_call.1} parent=1 // pred_check
      _
    $region67: #{tpu_custom_call.1} parent=1 // pred_check_branch
      %56 = sbr.rel (0) target = $region69
    $region68: #{tpu_custom_call.1} parent=1 // pred_region
      _
    $region69: #{tpu_custom_call.1} parent=1 // pred_fallthru
      _
    %v58 = vld [vmem:[%s0] sm:$0xff]
    %v59 = vpack.c.bf16 %v58, %v58
    %v60 = vld [vmem:[%s7] sm:$0xf]
    %v61 = vld [vmem:[%s1] sm:$0xff]
    %v62 = vpack.c.bf16 %v61, %v61
    %v63 = vld [vmem:[%s8] sm:$0x3]
    %vm64 = vcmask 31744
    %v66 = vsel %vm64, %v62, 0
    %vm68 = vcmask 1041408
    %v70 = vsel %vm68, %v63, 0
    %72 = vmatpush.bf16.msra.mxu0 0
    %73 = vmatpush.bf16.msra.mxu0 0
    %74 = vmatpush.bf16.msra.mxu0 0
    %75 = vmatpush.bf16.msra.mxu0 0
    %76 = vmatpush.bf16.msra.mxu0 0
    %77 = vmatpush.bf16.msra.mxu0 0
    %78 = vmatpush.bf16.msra.mxu0 0
    %79 = vmatpush.bf16.msra.mxu0 %v70
    %80 = vmatmul.bf16.gmra.mxu0 %v66
    %v81 = vpop.f32.mrf.mxu0
    %v82 = vadd.f32 0.0, %v81
    %v83 = vpop.f32.mrf.mxu0
    %84 = vdwg.mxu0
    %vm85 = vcmask 64512
    %v87 = vsel %vm85, %v59, 0
    %vm89 = vcmask 1043456
    %v91 = vsel %vm89, %v60, 0
    %93 = vmatpush.bf16.msra.mxu0 0
    %94 = vmatpush.bf16.msra.mxu0 0
    %95 = vmatpush.bf16.msra.mxu0 0
    %96 = vmatpush.bf16.msra.mxu0 0
    %97 = vmatpush.bf16.msra.mxu0 0
    %98 = vmatpush.bf16.msra.mxu0 0
    %99 = vmatpush.bf16.msra.mxu0 0
    %100 = vmatpush.bf16.msra.mxu0 %v91
    %101 = vmatmul.bf16.gmra.mxu0 %v87
    %v102 = vpop.f32.mrf.mxu0
    %v103 = vadd.f32 %v82, %v102
    %v104 = vpop.f32.mrf.mxu0
    %105 = vdwg.mxu0
    %v106 = vld [vmem:[%s2] sm:$0xff]
    %v107 = vpack.c.bf16 %v106, %v106
    %v108 = vld [vmem:[%s9] sm:$0x3]
    %v110 = vsel %vm64, %v107, 0
    %v113 = vsel %vm68, %v108, 0
    %115 = vmatpush.bf16.msra.mxu0 0
    %116 = vmatpush.bf16.msra.mxu0 0
    %117 = vmatpush.bf16.msra.mxu0 0
    %118 = vmatpush.bf16.msra.mxu0 0
    %119 = vmatpush.bf16.msra.mxu0 0
    %120 = vmatpush.bf16.msra.mxu0 0
    %121 = vmatpush.bf16.msra.mxu0 0
    %122 = vmatpush.bf16.msra.mxu0 %v113
    %123 = vmatmul.bf16.gmra.mxu0 %v110
    %v124 = vpop.f32.mrf.mxu0
    %v125 = vadd.f32 0.0, %v124
    %v126 = vpop.f32.mrf.mxu0
    %127 = vdwg.mxu0
    %v128 = vadd.f32 %v103, %v125
    %v129 = vld [vmem:[%s3] sm:$0xff]
    %v130 = vpack.c.bf16 %v129, %v129
    %v131 = vld [vmem:[%s10] sm:$0x3]
    %vm132 = vcmask 23552
    %v134 = vsel %vm132, %v130, 0
    %vm136 = vcmask 1040384
    %v137 = vsel %vm136, 4294967295, 65535
    %v138 = vsel %vm68, %v137, 0
    %v140 = vand.u32 %v131, %v138
    %142 = vmatpush.bf16.msra.mxu0 0
    %143 = vmatpush.bf16.msra.mxu0 0
    %144 = vmatpush.bf16.msra.mxu0 0
    %145 = vmatpush.bf16.msra.mxu0 0
    %146 = vmatpush.bf16.msra.mxu0 0
    %147 = vmatpush.bf16.msra.mxu0 0
    %148 = vmatpush.bf16.msra.mxu0 0
    %149 = vmatpush.bf16.msra.mxu0 %v140
    %150 = vmatmul.bf16.gmra.mxu0 %v134
    %v151 = vpop.f32.mrf.mxu0
    %v152 = vadd.f32 0.0, %v151
    %v153 = vpop.f32.mrf.mxu0
    %154 = vdwg.mxu0
    %v155 = vadd.f32 %v128, %v152
    %v156 = vld [vmem:[%s4] sm:$0xff]
    %v157 = vpack.c.bf16 %v156, %v156
    %v158 = vld [vmem:[%s11] sm:$0x3]
    %v160 = vsel %vm132, %v157, 0
    %v163 = vand.u32 %v158, %v138
    %165 = vmatpush.bf16.msra.mxu0 0
    %166 = vmatpush.bf16.msra.mxu0 0
    %167 = vmatpush.bf16.msra.mxu0 0
    %168 = vmatpush.bf16.msra.mxu0 0
    %169 = vmatpush.bf16.msra.mxu0 0
    %170 = vmatpush.bf16.msra.mxu0 0
    %171 = vmatpush.bf16.msra.mxu0 0
    %172 = vmatpush.bf16.msra.mxu0 %v163
    %173 = vmatmul.bf16.gmra.mxu0 %v160
    %v174 = vpop.f32.mrf.mxu0
    %v175 = vadd.f32 0.0, %v174
    %v176 = vpop.f32.mrf.mxu0
    %177 = vdwg.mxu0
    %v178 = vadd.f32 %v155, %v175
    %v179 = vld [vmem:[%s5] sm:$0xff]
    %v180 = vpack.c.bf16 %v179, %v179
    %v181 = vld [vmem:[%s12] sm:$0x7]
    %vm182 = vcmask 39936
    %v184 = vsel %vm182, %v180, 0
    %vm186 = vcmask 1042432
    %v187 = vsel %vm68, 4294967295, 65535
    %v188 = vsel %vm186, %v187, 0
    %v190 = vand.u32 %v181, %v188
    %192 = vmatpush.bf16.msra.mxu0 0
    %193 = vmatpush.bf16.msra.mxu0 0
    %194 = vmatpush.bf16.msra.mxu0 0
    %195 = vmatpush.bf16.msra.mxu0 0
    %196 = vmatpush.bf16.msra.mxu0 0
    %197 = vmatpush.bf16.msra.mxu0 0
    %198 = vmatpush.bf16.msra.mxu0 0
    %199 = vmatpush.bf16.msra.mxu0 %v190
    %200 = vmatmul.bf16.gmra.mxu0 %v184
    %v201 = vpop.f32.mrf.mxu0
    %v202 = vadd.f32 0.0, %v201
    %v203 = vpop.f32.mrf.mxu0
    %204 = vdwg.mxu0
    %v205 = vadd.f32 %v178, %v202
    %v206 = vld [vmem:[%s6] sm:$0xff]
    %v207 = vpack.c.bf16 %v206, %v206
    %v208 = vld [vmem:[%s13] sm:$0x3]
    %v210 = vsel %vm64, %v207, 0
    %v213 = vsel %vm68, %v208, 0
    %215 = vmatpush.bf16.msra.mxu0 0
    %216 = vmatpush.bf16.msra.mxu0 0
    %217 = vmatpush.bf16.msra.mxu0 0
    %218 = vmatpush.bf16.msra.mxu0 0
    %219 = vmatpush.bf16.msra.mxu0 0
    %220 = vmatpush.bf16.msra.mxu0 0
    %221 = vmatpush.bf16.msra.mxu0 0
    %222 = vmatpush.bf16.msra.mxu0 %v213
    %223 = vmatmul.bf16.gmra.mxu0 %v210
    %v224 = vpop.f32.mrf.mxu0
    %v225 = vadd.f32 0.0, %v224
    %v226 = vpop.f32.mrf.mxu0
    %227 = vdwg.mxu0
    %v228 = vadd.f32 %v205, %v225
    %v229 = vld [vmem:[%s14] sm:$0x1]
    %v231 = vperm.slane %v229, 0
    %v233 = vadd.f32 %v228, %v231
    %v234 = vmax.f32 %v233, 0.0
    %v235 = vpack.c.bf16 %v234, %v234
    %v236 = vld [vmem:[%s15] sm:$0xf]
    %v237 = vld [vmem:[%s15 + $0x4] sm:$0xf]
    %v238 = vld [vmem:[%s15 + $0x8] sm:$0xf]
    %v239 = vld [vmem:[%s15 + $0xc] sm:$0xf]
    %v240 = vld [vmem:[%s16] sm:$0x1]
    %v242 = vperm.slane %v240, 0
    %v248 = vunpack.c.l.b16 %v236
    %v249 = vunpack.c.l.b16 %v237
    %v250 = vunpack.c.l.b16 %v238
    %v251 = vunpack.c.l.b16 %v239
    %v252 = vpack.c.b16 %v249, %v248
    %v253 = vpack.c.b16 %v251, %v250
    %vm256 = vcmask 261120
    %v258 = vsel %vm256, %v235, 0
    %260 = vmatpush.bf16.msra.mxu0 0
    %261 = vmatpush.bf16.msra.mxu0 0
    %262 = vmatpush.bf16.msra.mxu0 0
    %263 = vmatpush.bf16.msra.mxu0 0
    %264 = vmatpush.bf16.msra.mxu0 0
    %265 = vmatpush.bf16.msra.mxu0 0
    %266 = vmatpush.bf16.msra.mxu0 %v253
    %267 = vmatpush.bf16.msra.mxu0 %v252
    %268 = vmatmul.bf16.gmra.mxu0 %v258
    %v269 = vpop.f32.mrf.mxu0
    %v270 = vadd.f32 %v242, %v269
    %v271 = vpop.f32.mrf.mxu0
    %272 = vdwg.mxu0
    %v273 = vxor.u32 %v270, 2147483648
    %v274 = vmul.f32 %v273, 1.442695
    %v275 = vpow.pop %v274
    %v276 = vadd.f32 %v275, 1.0
    %v277 = vrcp.pop %v276
    %v278 = vmul.f32 %v276, %v277
    %v279 = vsub.f32 1.0, %v278
    %v280 = vmul.f32 %v277, %v279
    %v281 = vadd.f32 %v277, %v280
    %vm282 = vweird.f32 %v276
    %vm283 = vweird.f32 %v277
    %vm284 = vmor %vm282, %vm283
    %v285 = vsel %vm284, %v277, %v281
    %v286 = vand.u32 2147483647, %v276
    %vm287 = vcmp.eq.f32.partialorder %v286, 8.507059e+37
    %v288 = vand.u32 %v276, 2147483648
    %v289 = vor.u32 1.1754944e-38, %v288
    %v290 = vsel %vm287, %v289, %v285
    %v291 = vmul.f32 1.0, %v290
    %vm292 = vcmask 97280
    %293 = vst.msk [vmem:[#allocation2] sm:$0xff] %vm292, %v291
    // Predicated region
    $region70: #{tpu_custom_call.1} parent=1 // pred_check
      _
    $region71: #{tpu_custom_call.1} parent=1 // pred_check_branch
      %295 = sbr.rel (0) target = $region73
    $region72: #{tpu_custom_call.1} parent=1 // pred_region
      %297 = vsyncadd [#allocation3], 0
      %s299 = sshll.u32 [#allocation2], 4
      %s300 = int_to_ptr.vmem [resolvable:$true] %s299
      %s301 = sshll.u32 %s17, 4
      %s302 = int_to_ptr.hbm [resolvable:$true] %s301
      %304 = dma.vmem_to_hbm [thread:$0]  %s300, 128, %s302, [#allocation3]
    $region73: #{tpu_custom_call.1} parent=1 // pred_fallthru
      _
    // Predicated region
    $region74: #{tpu_custom_call.1} parent=1 // pred_check
      _
    $region75: #{tpu_custom_call.1} parent=1 // pred_check_branch
      %306 = sbr.rel (0) target = $region77
    $region76: #{tpu_custom_call.1} parent=1 // pred_region
      %308 = dma.done [#allocation3], 128
    $region77: #{tpu_custom_call.1} parent=1 // pred_fallthru
      _
    %309 = vsyncpa [#allocation3], 1

</llo_original>
